<compile_context>
chip_gen: v5e
topology: v5e:2x2
jax: 0.10.0
libtpu: 0.0.40
codegen_flags: <defaults>
</compile_context>

<pallas_src>
import numpy as np
import jax
import jax.numpy as jnp
from jax import lax
from jax.experimental import pallas as pl
from jax.experimental.pallas import tpu as pltpu

BN_EPS = 1e-5
LANE = 128
SUB_ROWS = 128          # rows per BatchNorm-statistics sub-chunk


def _round_up(x, m):
    return (x + m - 1) // m * m


def _pick_batch_tile(B):
    """Largest block (amortizes per-step overhead) that still leaves >= 2 grid
    steps so the 'parallel' axis can shard across both TensorCores on v7x."""
    for cand in (1024, 512, 256, 128):
        if B % cand == 0 and B // cand >= 2:
            return cand
    for cand in (2048, 1024, 512, 256, 128):
        if B % cand == 0:
            return cand
    return B


# ------------------------------------------------------------------ kernel --
def _make_made_kernel(num_hidden, d_out, sub, n_sub):
    """Kernel refs: z, Wt_0..Wt_{H-1}, Wt_out, b_out, out."""

    def kernel(*refs):
        z_ref = refs[0]
        o_ref = refs[-1]
        layer_refs = refs[1:-1]
        inv_b = 1.0 / sub                       # static

        b_out = layer_refs[num_hidden + 1][:, :d_out]   # (1, d_out) f32

        # Static sub-chunk loop: amortizes grid-step overhead with big batch
        # blocks while keeping per-128-row BN semantics and bounding the live
        # f32 vregs per iteration (each iteration ends in a store).
        for c in range(n_sub):
            r0 = c * sub
            # bf16 cast on the VPU (input BlockSpec carries raw f32).
            x = z_ref[r0:r0 + sub, :].astype(jnp.bfloat16)

            # Hidden layers: masked linear -> BatchNorm1d (chunk stats) -> ReLU.
            # Hidden bias omitted: cancels exactly under gamma=1/beta=0 BN.
            for i in range(num_hidden):
                wt = layer_refs[i][...]          # bf16 (K_pad, 128), pre-masked
                h = jnp.dot(x, wt, preferred_element_type=jnp.float32)
                # One-pass statistics (no serial mean -> centered-var chain).
                s1 = jnp.sum(h, axis=0, keepdims=True) * inv_b
                s2 = jnp.sum(h * h, axis=0, keepdims=True) * inv_b
                var = jnp.maximum(s2 - s1 * s1, 0.0)
                h = (h - s1) * lax.rsqrt(var + BN_EPS)
                x = jnp.maximum(h, 0.0).astype(jnp.bfloat16)

            # Output layer: masked linear + bias (no BN).  Only the d_out real
            # columns are stored -> un-padded, 8x less HBM writeback.
            wt = layer_refs[num_hidden][...]     # bf16 (128, 128)
            res = jnp.dot(x, wt, preferred_element_type=jnp.float32)
            o_ref[r0:r0 + sub, :] = res[:, :d_out] + b_out

    return kernel


# ----------------------------------------------------------------- wrapper --
def made_forward(z, masked_weights, biases, *, batch_tile=None):
    """z: (B, D) f32.  masked_weights[i]: (out_i, in_i) already multiplied by
    the autoregressive mask.  biases[i]: (out_i,) (hidden biases unused by the
    kernel -- they cancel under BN; output bias is applied)."""
    num_layers = len(masked_weights)
    num_hidden = num_layers - 1
    B, D_in = z.shape
    D_out = masked_weights[-1].shape[0]

    if batch_tile is None:
        batch_tile = _pick_batch_tile(B)
    assert B % batch_tile == 0, "batch must be a multiple of batch_tile"
    assert batch_tile % 8 == 0 or batch_tile == B

    # BN-statistics sub-chunk size (128 rows when the block allows it).
    sub = SUB_ROWS if batch_tile % SUB_ROWS == 0 else batch_tile
    n_sub = batch_tile // sub

    z = jnp.asarray(z, jnp.float32)          # bf16 cast happens in-kernel

    args = [z]
    in_specs = [pl.BlockSpec((batch_tile, D_in), lambda i: (i, 0))]

    # Hidden weights: transpose to (in, out), zero-pad to lane width, bf16.
    prev_k = D_in
    for li in range(num_hidden):
        W = np.asarray(masked_weights[li], np.float32)        # (out, in)
        out_d, in_d = W.shape
        n_pad = _round_up(out_d, LANE)
        wt = np.zeros((prev_k, n_pad), np.float32)
        wt[:in_d, :out_d] = W.T
        wt = jnp.asarray(wt, jnp.bfloat16)
        args.append(wt)
        in_specs.append(pl.BlockSpec(wt.shape, lambda i: (0, 0)))  # resident
        prev_k = n_pad

    # Output layer: padded transposed weight (bf16) + padded bias (f32).
    W = np.asarray(masked_weights[-1], np.float32)
    out_d, in_d = W.shape
    n_out_pad = _round_up(out_d, LANE)
    wt = np.zeros((prev_k, n_out_pad), np.float32)
    wt[:in_d, :out_d] = W.T
    bt = np.zeros((1, n_out_pad), np.float32)
    bt[0, :out_d] = np.asarray(biases[-1], np.float32)
    args += [jnp.asarray(wt, jnp.bfloat16), jnp.asarray(bt, jnp.float32)]
    in_specs += [
        pl.BlockSpec(wt.shape, lambda i: (0, 0)),
        pl.BlockSpec((1, n_out_pad), lambda i: (0, 0)),
    ]

    out = pl.pallas_call(
        _make_made_kernel(num_hidden, D_out, sub, n_sub),
        out_shape=jax.ShapeDtypeStruct((B, D_out), jnp.float32),
        grid=(B // batch_tile,),
        in_specs=in_specs,
        # Un-padded output: last dim equals the full array dim -> valid block;
        # HBM layout is identical to the lane-packed (B//8, 128) view.
        out_specs=pl.BlockSpec((batch_tile, D_out), lambda i: (i, 0)),
        compiler_params=pltpu.CompilerParams(
            dimension_semantics=("parallel",),     # megacore on v7x
            vmem_limit_bytes=32 * 1024 * 1024,     # tiny footprint on all gens
        ),
    )(*args)

    return out


# ------------------------------------------------------- parameter builders --
def create_params(in_out, num_hidden, base_filters, rng, use_companion=False):
    hidden_dims = [in_out] + [base_filters] * num_hidden
    weights, units, biases = [], [], []
    for in_d, out_d in zip(hidden_dims[:-1], hidden_dims[1:]):
        scale = np.sqrt(2.0 / (out_d + in_d))
        weights.append((rng.randn(out_d, in_d) * scale).astype(np.float32))
        units.append((rng.randn(out_d, in_d) * scale).astype(np.float32))
        biases.append((rng.randn(out_d) * 0.01).astype(np.float32))
    scale = np.sqrt(2.0 / (in_out + hidden_dims[-1]))
    weights.append((rng.randn(in_out, hidden_dims[-1]) * scale).astype(np.float32))
    units.append((rng.randn(in_out, hidden_dims[-1]) * scale).astype(np.float32))
    biases.append((rng.randn(in_out) * 0.01).astype(np.float32))
    if not use_companion:
        units = None
    return weights, units, biases


def create_masks(in_out, num_hidden, base_filters, rng):
    """Mirror of MADE._create_masks, with a seeded numpy RNG."""
    m_prev = np.arange(in_out)
    hidden_dims = [in_out] + [base_filters] * num_hidden
    masks = []
    for in_d, out_d in zip(hidden_dims[:-1], hidden_dims[1:]):
        min_k = min(int(m_prev.min()), in_out - 2)
        m = rng.randint(min_k, in_out - 1, size=out_d)
        M = np.zeros((out_d, in_d), dtype=np.float32)
        for k in range(out_d):
            M[k, :] = (m_prev <= m[k]).astype(np.float32)
        masks.append(M)
        m_prev = m
    M = np.zeros((in_out, hidden_dims[-1]), dtype=np.float32)
    for k in range(hidden_dims[-1]):
        M[m_prev[k] + 1:, k] = 1.0
    masks.append(M)
    return masks


def prepare_layers(weights, units, biases, masks, use_companion=False):
    """Apply the autoregressive masks; fold the companion term (a per-output
    constant) into the bias."""
    masked_weights, eff_biases = [], []
    for i, (W, b, M) in enumerate(zip(weights, biases, masks)):
        Wm = W * M
        b_eff = b.copy()
        if use_companion:
            b_eff = b_eff + (units[i] * M).sum(axis=1)
        masked_weights.append(Wm)
        eff_biases.append(b_eff)
    return masked_weights, eff_biases


# ------------------------------------------------------------ pure-np ref --
def _bf16_round(a):
    return np.asarray(jnp.asarray(a, jnp.float32).astype(jnp.bfloat16)
                      .astype(jnp.float32))


def ref_forward(z, masked_weights, biases, stats_chunk):
    """Faithful reference of the PyTorch forward (linear+bias -> training-mode
    BN -> ReLU, final linear+bias), with BN stats per `stats_chunk` rows
    (matching the kernel's documented chunking) and bf16-rounded MXU operands,
    f32 math."""
    z = np.asarray(z, dtype=np.float32)
    Wr = [_bf16_round(W) for W in masked_weights]
    outs = []
    for t in range(0, z.shape[0], stats_chunk):
        x = _bf16_round(z[t:t + stats_chunk])
        for i in range(len(masked_weights) - 1):
            h = x @ Wr[i].T + np.asarray(biases[i], np.float32)
            mean = h.mean(axis=0)
            var = h.var(axis=0)  # biased, as BatchNorm uses for normalization
            h = (h - mean) / np.sqrt(var + BN_EPS)
            x = _bf16_round(np.maximum(h, 0.0))
        outs.append(x @ Wr[-1].T + np.asarray(biases[-1], np.float32))
    return np.concatenate(outs, axis=0)


# -------------------------------------------------------------------- main --
if __name__ == "__main__":
    in_out_features = 16
    num_hidden = 2
    base_filters = 32
    use_companion = False

    # Deterministic parameters + masks (synthetic, no checkpoint).
    prng = np.random.RandomState(0)
    weights, units, biases = create_params(
        in_out_features, num_hidden, base_filters, prng, use_companion)
    masks = create_masks(in_out_features, num_hidden, base_filters, prng)
    masked_weights, eff_biases = prepare_layers(
        weights, units, biases, masks, use_companion)

    # (1) Whole batch == one BN-stats chunk: exact PyTorch training-mode BN
    #     semantics (single grid step).
    B1 = 128
    z1 = jax.random.normal(jax.random.PRNGKey(0), (B1, in_out_features),
                           dtype=jnp.float32)
    out1 = jax.block_until_ready(made_forward(z1, masked_weights, eff_biases))
    ref1 = ref_forward(np.asarray(z1), masked_weights, eff_biases, SUB_ROWS)
    assert out1.shape == (B1, in_out_features)
    np.testing.assert_allclose(np.asarray(out1), ref1, rtol=3e-2, atol=3e-2)

    # (2) Larger batch: auto-picked 256-row blocks -> 2 parallel grid steps
    #     (both TensorCores on v7x) with the in-kernel 128-row BN sub-chunk
    #     loop and the un-padded output path.
    B2 = 512
    z2 = jax.random.normal(jax.random.PRNGKey(1), (B2, in_out_features),
                           dtype=jnp.float32)
    out2 = jax.block_until_ready(made_forward(z2, masked_weights, eff_biases))
    ref2 = ref_forward(np.asarray(z2), masked_weights, eff_biases, SUB_ROWS)
    assert out2.shape == (B2, in_out_features)
    np.testing.assert_allclose(np.asarray(out2), ref2, rtol=3e-2, atol=3e-2)

    print("KERNEL_OK")
</pallas_src>

<mosaic_0001>
module attributes {stable_mosaic.version = 11 : i64} {
  func.func @kernel(%arg0: i32, %arg1: memref<128x16xf32, #tpu.memory_space<vmem>>, %arg2: memref<16x128xbf16, #tpu.memory_space<vmem>>, %arg3: memref<128x128xbf16, #tpu.memory_space<vmem>>, %arg4: memref<128x128xbf16, #tpu.memory_space<vmem>>, %arg5: memref<1x128xf32, #tpu.memory_space<vmem>>, %arg6: memref<128x16xf32, #tpu.memory_space<vmem>>) attributes {dimension_semantics = [#tpu.dimension_semantics<parallel>], iteration_bounds = array<i64: 1>, scalar_prefetch = 0 : i64, scratch_operands = 0 : i64, tpu.core_type = #tpu.core_type<tc>, window_params = [{transform_indices = @transform_0, window_bounds = array<i64: 128, 16>}, {pipeline_mode = #tpu.pipeline_mode<synchronous>, transform_indices = @transform_1, window_bounds = array<i64: 16, 128>}, {pipeline_mode = #tpu.pipeline_mode<synchronous>, transform_indices = @transform_2, window_bounds = array<i64: 128, 128>}, {pipeline_mode = #tpu.pipeline_mode<synchronous>, transform_indices = @transform_3, window_bounds = array<i64: 128, 128>}, {pipeline_mode = #tpu.pipeline_mode<synchronous>, transform_indices = @transform_4, window_bounds = array<i64: 1, 128>}, {transform_indices = @transform_5, window_bounds = array<i64: 128, 16>}]} {
    %c0 = arith.constant 0 : index
    %c0_0 = arith.constant 0 : index
    %0 = vector.load %arg5[%c0, %c0_0] : memref<1x128xf32, #tpu.memory_space<vmem>>, vector<1x16xf32>
    %c0_1 = arith.constant 0 : index
    %c0_2 = arith.constant 0 : index
    %1 = vector.load %arg1[%c0_1, %c0_2] : memref<128x16xf32, #tpu.memory_space<vmem>>, vector<128x16xf32>
    %2 = arith.truncf %1 : vector<128x16xf32> to vector<128x16xbf16>
    %c0_3 = arith.constant 0 : index
    %c0_4 = arith.constant 0 : index
    %3 = vector.load %arg2[%c0_3, %c0_4] : memref<16x128xbf16, #tpu.memory_space<vmem>>, vector<16x128xbf16>
    %cst = arith.constant dense<0.000000e+00> : vector<128x128xf32>
    %4 = tpu.matmul %2, %3, %cst {dimension_numbers = #tpu.dot_dimension_numbers<[1], [0], [0], [1], [0, 0, 1, 1], [], []>} : vector<128x16xbf16>, vector<16x128xbf16>, vector<128x128xf32> -> vector<128x128xf32>
    %cst_5 = arith.constant dense<0.000000e+00> : vector<128xf32>
    %5 = vector.multi_reduction <add>, %4, %cst_5 [0] : vector<128x128xf32> to vector<128xf32>
    %6 = vector.shape_cast %5 : vector<128xf32> to vector<1x128xf32>
    %cst_6 = arith.constant 7.812500e-03 : f32
    %7 = vector.broadcast %cst_6 : f32 to vector<1x128xf32>
    %8 = arith.mulf %6, %7 : vector<1x128xf32>
    %9 = arith.mulf %4, %4 : vector<128x128xf32>
    %cst_7 = arith.constant dense<0.000000e+00> : vector<128xf32>
    %10 = vector.multi_reduction <add>, %9, %cst_7 [0] : vector<128x128xf32> to vector<128xf32>
    %11 = vector.shape_cast %10 : vector<128xf32> to vector<1x128xf32>
    %cst_8 = arith.constant 7.812500e-03 : f32
    %12 = vector.broadcast %cst_8 : f32 to vector<1x128xf32>
    %13 = arith.mulf %11, %12 : vector<1x128xf32>
    %14 = arith.mulf %8, %8 : vector<1x128xf32>
    %15 = arith.subf %13, %14 : vector<1x128xf32>
    %cst_9 = arith.constant 0.000000e+00 : f32
    %16 = vector.broadcast %cst_9 : f32 to vector<1x128xf32>
    %17 = arith.maximumf %15, %16 : vector<1x128xf32>
    %18 = vector.broadcast %8 : vector<1x128xf32> to vector<128x128xf32>
    %19 = arith.subf %4, %18 : vector<128x128xf32>
    %cst_10 = arith.constant 9.99999974E-6 : f32
    %20 = vector.broadcast %cst_10 : f32 to vector<1x128xf32>
    %21 = arith.addf %17, %20 : vector<1x128xf32>
    %22 = math.rsqrt %21 : vector<1x128xf32>
    %23 = vector.broadcast %22 : vector<1x128xf32> to vector<128x128xf32>
    %24 = arith.mulf %19, %23 : vector<128x128xf32>
    %cst_11 = arith.constant 0.000000e+00 : f32
    %25 = vector.broadcast %cst_11 : f32 to vector<128x128xf32>
    %26 = arith.maximumf %24, %25 : vector<128x128xf32>
    %27 = arith.truncf %26 : vector<128x128xf32> to vector<128x128xbf16>
    %c0_12 = arith.constant 0 : index
    %c0_13 = arith.constant 0 : index
    %28 = vector.load %arg3[%c0_12, %c0_13] : memref<128x128xbf16, #tpu.memory_space<vmem>>, vector<128x128xbf16>
    %cst_14 = arith.constant dense<0.000000e+00> : vector<128x128xf32>
    %29 = tpu.matmul %27, %28, %cst_14 {dimension_numbers = #tpu.dot_dimension_numbers<[1], [0], [0], [1], [0, 0, 1, 1], [], []>} : vector<128x128xbf16>, vector<128x128xbf16>, vector<128x128xf32> -> vector<128x128xf32>
    %cst_15 = arith.constant dense<0.000000e+00> : vector<128xf32>
    %30 = vector.multi_reduction <add>, %29, %cst_15 [0] : vector<128x128xf32> to vector<128xf32>
    %31 = vector.shape_cast %30 : vector<128xf32> to vector<1x128xf32>
    %cst_16 = arith.constant 7.812500e-03 : f32
    %32 = vector.broadcast %cst_16 : f32 to vector<1x128xf32>
    %33 = arith.mulf %31, %32 : vector<1x128xf32>
    %34 = arith.mulf %29, %29 : vector<128x128xf32>
    %cst_17 = arith.constant dense<0.000000e+00> : vector<128xf32>
    %35 = vector.multi_reduction <add>, %34, %cst_17 [0] : vector<128x128xf32> to vector<128xf32>
    %36 = vector.shape_cast %35 : vector<128xf32> to vector<1x128xf32>
    %cst_18 = arith.constant 7.812500e-03 : f32
    %37 = vector.broadcast %cst_18 : f32 to vector<1x128xf32>
    %38 = arith.mulf %36, %37 : vector<1x128xf32>
    %39 = arith.mulf %33, %33 : vector<1x128xf32>
    %40 = arith.subf %38, %39 : vector<1x128xf32>
    %cst_19 = arith.constant 0.000000e+00 : f32
    %41 = vector.broadcast %cst_19 : f32 to vector<1x128xf32>
    %42 = arith.maximumf %40, %41 : vector<1x128xf32>
    %43 = vector.broadcast %33 : vector<1x128xf32> to vector<128x128xf32>
    %44 = arith.subf %29, %43 : vector<128x128xf32>
    %cst_20 = arith.constant 9.99999974E-6 : f32
    %45 = vector.broadcast %cst_20 : f32 to vector<1x128xf32>
    %46 = arith.addf %42, %45 : vector<1x128xf32>
    %47 = math.rsqrt %46 : vector<1x128xf32>
    %48 = vector.broadcast %47 : vector<1x128xf32> to vector<128x128xf32>
    %49 = arith.mulf %44, %48 : vector<128x128xf32>
    %cst_21 = arith.constant 0.000000e+00 : f32
    %50 = vector.broadcast %cst_21 : f32 to vector<128x128xf32>
    %51 = arith.maximumf %49, %50 : vector<128x128xf32>
    %52 = arith.truncf %51 : vector<128x128xf32> to vector<128x128xbf16>
    %c0_22 = arith.constant 0 : index
    %c0_23 = arith.constant 0 : index
    %53 = vector.load %arg4[%c0_22, %c0_23] : memref<128x128xbf16, #tpu.memory_space<vmem>>, vector<128x128xbf16>
    %cst_24 = arith.constant dense<0.000000e+00> : vector<128x128xf32>
    %54 = tpu.matmul %52, %53, %cst_24 {dimension_numbers = #tpu.dot_dimension_numbers<[1], [0], [0], [1], [0, 0, 1, 1], [], []>} : vector<128x128xbf16>, vector<128x128xbf16>, vector<128x128xf32> -> vector<128x128xf32>
    %55 = vector.extract_strided_slice %54 {offsets = [0, 0], sizes = [128, 16], strides = [1, 1]} : vector<128x128xf32> to vector<128x16xf32>
    %56 = vector.broadcast %0 : vector<1x16xf32> to vector<128x16xf32>
    %57 = arith.addf %55, %56 : vector<128x16xf32>
    %c0_25 = arith.constant 0 : index
    %c0_26 = arith.constant 0 : index
    %58 = vector.load %arg6[%c0_25, %c0_26] : memref<128x16xf32, #tpu.memory_space<vmem>>, vector<128x16xf32>
    tpu.vector_store %arg6[%c0_25, %c0_26], %57 {strides = array<i32>} : memref<128x16xf32, #tpu.memory_space<vmem>>, vector<128x16xf32>,
    return
  }
  func.func @transform_0(%arg0: i32) -> (i32, i32) {
    %c0_i32 = arith.constant 0 : i32
    %c0_i32_0 = arith.constant 0 : i32
    return %arg0, %c0_i32 : i32, i32
  }
  func.func @transform_1(%arg0: i32) -> (i32, i32) {
    %c0_i32 = arith.constant 0 : i32
    %c0_i32_0 = arith.constant 0 : i32
    %c0_i32_1 = arith.constant 0 : i32
    return %c0_i32, %c0_i32_0 : i32, i32
  }
  func.func @transform_2(%arg0: i32) -> (i32, i32) {
    %c0_i32 = arith.constant 0 : i32
    %c0_i32_0 = arith.constant 0 : i32
    %c0_i32_1 = arith.constant 0 : i32
    return %c0_i32, %c0_i32_0 : i32, i32
  }
  func.func @transform_3(%arg0: i32) -> (i32, i32) {
    %c0_i32 = arith.constant 0 : i32
    %c0_i32_0 = arith.constant 0 : i32
    %c0_i32_1 = arith.constant 0 : i32
    return %c0_i32, %c0_i32_0 : i32, i32
  }
  func.func @transform_4(%arg0: i32) -> (i32, i32) {
    %c0_i32 = arith.constant 0 : i32
    %c0_i32_0 = arith.constant 0 : i32
    %c0_i32_1 = arith.constant 0 : i32
    return %c0_i32, %c0_i32_0 : i32, i32
  }
  func.func @transform_5(%arg0: i32) -> (i32, i32) {
    %c0_i32 = arith.constant 0 : i32
    %c0_i32_0 = arith.constant 0 : i32
    return %arg0, %c0_i32 : i32, i32
  }
}

</mosaic_0001>

<llo_original>
// kernel: tpu_custom_call.1
$region0: #{tpu_custom_call.1}
  #allocation0 [shape = 'u32[]', space=smem, size = 0x4, offset = 0x4, fixed_abs, tag = 'smem constant byte address 0x4 - core index']
  #allocation1 [shape = 'u32[72,128]{1,0:T(1,128)}', space=vmem, size = 0x9000, scoped, tag = 'internal scratch']
  %s0 = inlined_call_operand.vmem [shape: f32[128,16], index: 0, kind: input, shape index: {}]
  %s1 = inlined_call_operand.vmem [shape: bf16[16,128], index: 1, kind: input, shape index: {}]
  %s2 = inlined_call_operand.vmem [shape: bf16[128,128], index: 2, kind: input, shape index: {}]
  %s3 = inlined_call_operand.vmem [shape: bf16[128,128], index: 3, kind: input, shape index: {}]
  %s4 = inlined_call_operand.vmem [shape: f32[1,128], index: 4, kind: input, shape index: {}]
  %s5 = inlined_call_operand.vmem [shape: f32[128,16], index: 5, kind: output, shape index: {}]
  %s6 = sld [smem:[#allocation0]]
  $region30: #{tpu_custom_call.1} parent=0
    _
  %s8 = ssub.s32 1, %s6
  %s9 = scalar_select 0, %s8, %s6
  // Predicated region
  $region2: #{tpu_custom_call.1} parent=0 // pred_check
    _
  $region3: #{tpu_custom_call.1} parent=0 // pred_check_branch
    %11 = sbr.rel (0) target = $region5
  $region4: #{tpu_custom_call.1} parent=0 // pred_region
    _
  $region5: #{tpu_custom_call.1} parent=0 // pred_fallthru
    _
  // Predicated region
  $region6: #{tpu_custom_call.1} parent=0 // pred_check
    _
  $region7: #{tpu_custom_call.1} parent=0 // pred_check_branch
    %13 = sbr.rel (0) target = $region9
  $region8: #{tpu_custom_call.1} parent=0 // pred_region
    _
  $region9: #{tpu_custom_call.1} parent=0 // pred_fallthru
    _
  // Predicated region
  $region10: #{tpu_custom_call.1} parent=0 // pred_check
    _
  $region11: #{tpu_custom_call.1} parent=0 // pred_check_branch
    %15 = sbr.rel (0) target = $region13
  $region12: #{tpu_custom_call.1} parent=0 // pred_region
    _
  $region13: #{tpu_custom_call.1} parent=0 // pred_fallthru
    _
  // Predicated region
  $region14: #{tpu_custom_call.1} parent=0 // pred_check
    _
  $region15: #{tpu_custom_call.1} parent=0 // pred_check_branch
    %17 = sbr.rel (0) target = $region17
  $region16: #{tpu_custom_call.1} parent=0 // pred_region
    _
  $region17: #{tpu_custom_call.1} parent=0 // pred_fallthru
    _
  // Predicated region
  $region18: #{tpu_custom_call.1} parent=0 // pred_check
    _
  $region19: #{tpu_custom_call.1} parent=0 // pred_check_branch
    %19 = sbr.rel (0) target = $region21
  $region20: #{tpu_custom_call.1} parent=0 // pred_region
    _
  $region21: #{tpu_custom_call.1} parent=0 // pred_fallthru
    _
  %v21 = vld [vmem:[%s4] sm:$0x1]
  %v22 = vld [vmem:[%s0] sm:$0xff]
  %v23 = vld [vmem:[%s0 + $0x8] sm:$0xff]
  %v24 = vld [vmem:[%s0 + $0x10] sm:$0xff]
  %v25 = vld [vmem:[%s0 + $0x18] sm:$0xff]
  %v26 = vld [vmem:[%s0 + $0x20] sm:$0xff]
  %v27 = vld [vmem:[%s0 + $0x28] sm:$0xff]
  %v28 = vld [vmem:[%s0 + $0x30] sm:$0xff]
  %v29 = vld [vmem:[%s0 + $0x38] sm:$0xff]
  %v30 = vld [vmem:[%s0 + $0x40] sm:$0xff]
  %v31 = vld [vmem:[%s0 + $0x48] sm:$0xff]
  %v32 = vld [vmem:[%s0 + $0x50] sm:$0xff]
  %v33 = vld [vmem:[%s0 + $0x58] sm:$0xff]
  %v34 = vld [vmem:[%s0 + $0x60] sm:$0xff]
  %v35 = vld [vmem:[%s0 + $0x68] sm:$0xff]
  %v36 = vld [vmem:[%s0 + $0x70] sm:$0xff]
  %v37 = vld [vmem:[%s0 + $0x78] sm:$0xff]
  %v38 = vpack.c.bf16 %v23, %v22
  %v39 = vpack.c.bf16 %v25, %v24
  %v40 = vpack.c.bf16 %v27, %v26
  %v41 = vpack.c.bf16 %v29, %v28
  %v42 = vpack.c.bf16 %v31, %v30
  %v43 = vpack.c.bf16 %v33, %v32
  %v44 = vpack.c.bf16 %v35, %v34
  %v45 = vpack.c.bf16 %v37, %v36
  %v46 = vld [vmem:[%s1] sm:$0xf]
  %v47 = vld [vmem:[%s1 + $0x4] sm:$0xf]
  %v50 = vunpack.c.l.b16 %v46
  %v51 = vunpack.c.l.b16 %v47
  %v52 = vpack.c.b16 %v51, %v50
  %vm54 = vcmask 130048
  %v56 = vsel %vm54, %v38, 0
  %v59 = vsel %vm54, %v39, 0
  %v62 = vsel %vm54, %v40, 0
  %v65 = vsel %vm54, %v41, 0
  %v68 = vsel %vm54, %v42, 0
  %v71 = vsel %vm54, %v43, 0
  %v74 = vsel %vm54, %v44, 0
  %v77 = vsel %vm54, %v45, 0
  %79 = vmatpush.bf16.msra.mxu0 0
  %80 = vmatpush.bf16.msra.mxu0 0
  %81 = vmatpush.bf16.msra.mxu0 0
  %82 = vmatpush.bf16.msra.mxu0 0
  %83 = vmatpush.bf16.msra.mxu0 0
  %84 = vmatpush.bf16.msra.mxu0 0
  %85 = vmatpush.bf16.msra.mxu0 0
  %86 = vmatpush.bf16.msra.mxu0 %v52
  %87 = vmatmul.bf16.gmra.mxu0 %v56
  %v88 = vpop.f32.mrf.mxu0
  %v89 = vadd.f32 0.0, %v88
  %v90 = vpop.f32.mrf.mxu0
  %v91 = vadd.f32 0.0, %v90
  %92 = vmatmul.bf16.gmra.mxu0 %v59
  %v93 = vpop.f32.mrf.mxu0
  %v94 = vadd.f32 0.0, %v93
  %v95 = vpop.f32.mrf.mxu0
  %v96 = vadd.f32 0.0, %v95
  %97 = vmatmul.bf16.gmra.mxu0 %v62
  %v98 = vpop.f32.mrf.mxu0
  %v99 = vadd.f32 0.0, %v98
  %v100 = vpop.f32.mrf.mxu0
  %v101 = vadd.f32 0.0, %v100
  %102 = vmatmul.bf16.gmra.mxu0 %v65
  %v103 = vpop.f32.mrf.mxu0
  %v104 = vadd.f32 0.0, %v103
  %v105 = vpop.f32.mrf.mxu0
  %v106 = vadd.f32 0.0, %v105
  %107 = vmatmul.bf16.gmra.mxu0 %v68
  %v108 = vpop.f32.mrf.mxu0
  %v109 = vadd.f32 0.0, %v108
  %v110 = vpop.f32.mrf.mxu0
  %v111 = vadd.f32 0.0, %v110
  %112 = vmatmul.bf16.gmra.mxu0 %v71
  %v113 = vpop.f32.mrf.mxu0
  %v114 = vadd.f32 0.0, %v113
  %v115 = vpop.f32.mrf.mxu0
  %v116 = vadd.f32 0.0, %v115
  %117 = vmatmul.bf16.gmra.mxu0 %v74
  %v118 = vpop.f32.mrf.mxu0
  %v119 = vadd.f32 0.0, %v118
  %v120 = vpop.f32.mrf.mxu0
  %v121 = vadd.f32 0.0, %v120
  %122 = vmatmul.bf16.gmra.mxu0 %v77
  %v123 = vpop.f32.mrf.mxu0
  %v124 = vadd.f32 0.0, %v123
  %v125 = vpop.f32.mrf.mxu0
  %v126 = vadd.f32 0.0, %v125
  %127 = vdwg.mxu0
  %v128 = vadd.f32 %v89, %v91
  %v129 = vadd.f32 %v128, %v94
  %v130 = vadd.f32 %v129, %v96
  %v131 = vadd.f32 %v130, %v99
  %v132 = vadd.f32 %v131, %v101
  %v133 = vadd.f32 %v132, %v104
  %v134 = vadd.f32 %v133, %v106
  %v135 = vadd.f32 %v134, %v109
  %v136 = vadd.f32 %v135, %v111
  %v137 = vadd.f32 %v136, %v114
  %v138 = vadd.f32 %v137, %v116
  %v139 = vadd.f32 %v138, %v119
  %v140 = vadd.f32 %v139, %v121
  %v141 = vadd.f32 %v140, %v124
  %v142 = vadd.f32 %v141, %v126
  %v143 = vrot.slane %v142, 4
  %v144 = vadd.f32 %v142, %v143
  %v145 = vrot.slane %v144, 2
  %v146 = vadd.f32 %v144, %v145
  %v147 = vrot.slane %v146, 1
  %v148 = vadd.f32 %v146, %v147
  %v149 = vmul.f32 %v148, 0.0078125
  %v150 = vmul.f32 %v89, %v89
  %v151 = vmul.f32 %v91, %v91
  %v152 = vmul.f32 %v94, %v94
  %v153 = vmul.f32 %v96, %v96
  %v154 = vmul.f32 %v99, %v99
  %v155 = vmul.f32 %v101, %v101
  %v156 = vmul.f32 %v104, %v104
  %v157 = vmul.f32 %v106, %v106
  %v158 = vmul.f32 %v109, %v109
  %v159 = vmul.f32 %v111, %v111
  %v160 = vmul.f32 %v114, %v114
  %v161 = vmul.f32 %v116, %v116
  %v162 = vmul.f32 %v119, %v119
  %v163 = vmul.f32 %v121, %v121
  %v164 = vmul.f32 %v124, %v124
  %v165 = vmul.f32 %v126, %v126
  %v166 = vadd.f32 %v150, %v151
  %v167 = vadd.f32 %v166, %v152
  %v168 = vadd.f32 %v167, %v153
  %v169 = vadd.f32 %v168, %v154
  %v170 = vadd.f32 %v169, %v155
  %v171 = vadd.f32 %v170, %v156
  %v172 = vadd.f32 %v171, %v157
  %v173 = vadd.f32 %v172, %v158
  %v174 = vadd.f32 %v173, %v159
  %v175 = vadd.f32 %v174, %v160
  %v176 = vadd.f32 %v175, %v161
  %v177 = vadd.f32 %v176, %v162
  %v178 = vadd.f32 %v177, %v163
  %v179 = vadd.f32 %v178, %v164
  %v180 = vadd.f32 %v179, %v165
  %v181 = vrot.slane %v180, 4
  %v182 = vadd.f32 %v180, %v181
  %v183 = vrot.slane %v182, 2
  %v184 = vadd.f32 %v182, %v183
  %v185 = vrot.slane %v184, 1
  %v186 = vadd.f32 %v184, %v185
  %v187 = vmul.f32 %v186, 0.0078125
  %v188 = vmul.f32 %v149, %v149
  %v189 = vsub.f32 %v187, %v188
  %v190 = vmax.f32 %v189, 0.0
  %v191 = vsub.f32 %v89, %v149
  %v192 = vsub.f32 %v91, %v149
  %v193 = vsub.f32 %v94, %v149
  %v194 = vsub.f32 %v96, %v149
  %v195 = vsub.f32 %v99, %v149
  %v196 = vsub.f32 %v101, %v149
  %v197 = vsub.f32 %v104, %v149
  %v198 = vsub.f32 %v106, %v149
  %v199 = vsub.f32 %v109, %v149
  %v200 = vsub.f32 %v111, %v149
  %v201 = vsub.f32 %v114, %v149
  %v202 = vsub.f32 %v116, %v149
  %v203 = vsub.f32 %v119, %v149
  %v204 = vsub.f32 %v121, %v149
  %v205 = vsub.f32 %v124, %v149
  %v206 = vsub.f32 %v126, %v149
  %v207 = vadd.f32 %v190, 1e-05
  %v208 = vrsqrt.pop %v207
  %v209 = vmul.f32 %v208, %v207
  %v210 = vmul.f32 %v209, %v208
  %v211 = vmul.f32 0.5, %v210
  %v212 = vsub.f32 1.5, %v211
  %v213 = vmul.f32 %v208, %v212
  %vm214 = vweird.f32 %v207
  %vm215 = vweird.f32 %v208
  %vm216 = vmor %vm214, %vm215
  %v217 = vsel %vm216, %v208, %v213
  %v218 = vmul.f32 %v191, %v217
  %v219 = vmul.f32 %v192, %v217
  %v220 = vmul.f32 %v193, %v217
  %v221 = vmul.f32 %v194, %v217
  %v222 = vmul.f32 %v195, %v217
  %v223 = vmul.f32 %v196, %v217
  %v224 = vmul.f32 %v197, %v217
  %v225 = vmul.f32 %v198, %v217
  %v226 = vmul.f32 %v199, %v217
  %v227 = vmul.f32 %v200, %v217
  %v228 = vmul.f32 %v201, %v217
  %v229 = vmul.f32 %v202, %v217
  %v230 = vmul.f32 %v203, %v217
  %v231 = vmul.f32 %v204, %v217
  %v232 = vmul.f32 %v205, %v217
  %v233 = vmul.f32 %v206, %v217
  %v234 = vmax.f32 %v218, 0.0
  %v235 = vmax.f32 %v219, 0.0
  %v236 = vmax.f32 %v220, 0.0
  %v237 = vmax.f32 %v221, 0.0
  %v238 = vmax.f32 %v222, 0.0
  %v239 = vmax.f32 %v223, 0.0
  %v240 = vmax.f32 %v224, 0.0
  %v241 = vmax.f32 %v225, 0.0
  %v242 = vmax.f32 %v226, 0.0
  %v243 = vmax.f32 %v227, 0.0
  %v244 = vmax.f32 %v228, 0.0
  %v245 = vmax.f32 %v229, 0.0
  %v246 = vmax.f32 %v230, 0.0
  %v247 = vmax.f32 %v231, 0.0
  %v248 = vmax.f32 %v232, 0.0
  %v249 = vmax.f32 %v233, 0.0
  %v250 = vpack.c.bf16 %v235, %v234
  %v251 = vpack.c.bf16 %v237, %v236
  %v252 = vpack.c.bf16 %v239, %v238
  %v253 = vpack.c.bf16 %v241, %v240
  %v254 = vpack.c.bf16 %v243, %v242
  %v255 = vpack.c.bf16 %v245, %v244
  %v256 = vpack.c.bf16 %v247, %v246
  %v257 = vpack.c.bf16 %v249, %v248
  %v258 = vld [vmem:[%s2] sm:$0xf]
  %v259 = vld [vmem:[%s2 + $0x4] sm:$0xf]
  %v260 = vld [vmem:[%s2 + $0x8] sm:$0xf]
  %v261 = vld [vmem:[%s2 + $0xc] sm:$0xf]
  %v262 = vld [vmem:[%s2 + $0x10] sm:$0xf]
  %v263 = vld [vmem:[%s2 + $0x14] sm:$0xf]
  %v264 = vld [vmem:[%s2 + $0x18] sm:$0xf]
  %v265 = vld [vmem:[%s2 + $0x1c] sm:$0xf]
  %v266 = vld [vmem:[%s2 + $0x20] sm:$0xf]
  %v267 = vld [vmem:[%s2 + $0x24] sm:$0xf]
  %v268 = vld [vmem:[%s2 + $0x28] sm:$0xf]
  %v269 = vld [vmem:[%s2 + $0x2c] sm:$0xf]
  %v270 = vld [vmem:[%s2 + $0x30] sm:$0xf]
  %v271 = vld [vmem:[%s2 + $0x34] sm:$0xf]
  %v272 = vld [vmem:[%s2 + $0x38] sm:$0xf]
  %v273 = vld [vmem:[%s2 + $0x3c] sm:$0xf]
  %v290 = vunpack.c.l.b16 %v258
  %v291 = vunpack.c.l.b16 %v259
  %v292 = vunpack.c.l.b16 %v260
  %v293 = vunpack.c.l.b16 %v261
  %v294 = vunpack.c.l.b16 %v262
  %v295 = vunpack.c.l.b16 %v263
  %v296 = vunpack.c.l.b16 %v264
  %v297 = vunpack.c.l.b16 %v265
  %v298 = vunpack.c.l.b16 %v266
  %v299 = vunpack.c.l.b16 %v267
  %v300 = vunpack.c.l.b16 %v268
  %v301 = vunpack.c.l.b16 %v269
  %v302 = vunpack.c.l.b16 %v270
  %v303 = vunpack.c.l.b16 %v271
  %v304 = vunpack.c.l.b16 %v272
  %v305 = vunpack.c.l.b16 %v273
  %v306 = vpack.c.b16 %v291, %v290
  %v307 = vpack.c.b16 %v293, %v292
  %v308 = vpack.c.b16 %v295, %v294
  %v309 = vpack.c.b16 %v297, %v296
  %v310 = vpack.c.b16 %v299, %v298
  %v311 = vpack.c.b16 %v301, %v300
  %v312 = vpack.c.b16 %v303, %v302
  %v313 = vpack.c.b16 %v305, %v304
  %322 = vmatpush.bf16.msra.mxu0 %v313
  %323 = vmatpush.bf16.msra.mxu0 %v312
  %324 = vmatpush.bf16.msra.mxu0 %v311
  %325 = vmatpush.bf16.msra.mxu0 %v310
  %326 = vmatpush.bf16.msra.mxu0 %v309
  %327 = vmatpush.bf16.msra.mxu0 %v308
  %328 = vmatpush.bf16.msra.mxu0 %v307
  %329 = vmatpush.bf16.msra.mxu0 %v306
  %330 = vmatmul.bf16.gmra.mxu0 %v250
  %v331 = vpop.f32.mrf.mxu0
  %v332 = vadd.f32 0.0, %v331
  %v333 = vpop.f32.mrf.mxu0
  %v334 = vadd.f32 0.0, %v333
  %335 = vmatmul.bf16.gmra.mxu0 %v251
  %v336 = vpop.f32.mrf.mxu0
  %v337 = vadd.f32 0.0, %v336
  %v338 = vpop.f32.mrf.mxu0
  %v339 = vadd.f32 0.0, %v338
  %340 = vmatmul.bf16.gmra.mxu0 %v252
  %v341 = vpop.f32.mrf.mxu0
  %v342 = vadd.f32 0.0, %v341
  %v343 = vpop.f32.mrf.mxu0
  %v344 = vadd.f32 0.0, %v343
  %345 = vmatmul.bf16.gmra.mxu0 %v253
  %v346 = vpop.f32.mrf.mxu0
  %v347 = vadd.f32 0.0, %v346
  %v348 = vpop.f32.mrf.mxu0
  %v349 = vadd.f32 0.0, %v348
  %350 = vmatmul.bf16.gmra.mxu0 %v254
  %v351 = vpop.f32.mrf.mxu0
  %v352 = vadd.f32 0.0, %v351
  %v353 = vpop.f32.mrf.mxu0
  %v354 = vadd.f32 0.0, %v353
  %355 = vmatmul.bf16.gmra.mxu0 %v255
  %v356 = vpop.f32.mrf.mxu0
  %v357 = vadd.f32 0.0, %v356
  %v358 = vpop.f32.mrf.mxu0
  %v359 = vadd.f32 0.0, %v358
  %360 = vmatmul.bf16.gmra.mxu0 %v256
  %v361 = vpop.f32.mrf.mxu0
  %v362 = vadd.f32 0.0, %v361
  %v363 = vpop.f32.mrf.mxu0
  %v364 = vadd.f32 0.0, %v363
  %365 = vmatmul.bf16.gmra.mxu0 %v257
  %v366 = vpop.f32.mrf.mxu0
  %v367 = vadd.f32 0.0, %v366
  %v368 = vpop.f32.mrf.mxu0
  %v369 = vadd.f32 0.0, %v368
  %370 = vdwg.mxu0
  %v371 = vadd.f32 %v332, %v334
  %v372 = vadd.f32 %v371, %v337
  %v373 = vadd.f32 %v372, %v339
  %v374 = vadd.f32 %v373, %v342
  %v375 = vadd.f32 %v374, %v344
  %v376 = vadd.f32 %v375, %v347
  %v377 = vadd.f32 %v376, %v349
  %v378 = vadd.f32 %v377, %v352
  %v379 = vadd.f32 %v378, %v354
  %v380 = vadd.f32 %v379, %v357
  %v381 = vadd.f32 %v380, %v359
  %v382 = vadd.f32 %v381, %v362
  %v383 = vadd.f32 %v382, %v364
  %v384 = vadd.f32 %v383, %v367
  %v385 = vadd.f32 %v384, %v369
  %v386 = vrot.slane %v385, 4
  %v387 = vadd.f32 %v385, %v386
  %v388 = vrot.slane %v387, 2
  %v389 = vadd.f32 %v387, %v388
  %v390 = vrot.slane %v389, 1
  %v391 = vadd.f32 %v389, %v390
  %v392 = vmul.f32 %v391, 0.0078125
  %v393 = vmul.f32 %v332, %v332
  %v394 = vmul.f32 %v334, %v334
  %v395 = vmul.f32 %v337, %v337
  %v396 = vmul.f32 %v339, %v339
  %v397 = vmul.f32 %v342, %v342
  %v398 = vmul.f32 %v344, %v344
  %v399 = vmul.f32 %v347, %v347
  %v400 = vmul.f32 %v349, %v349
  %v401 = vmul.f32 %v352, %v352
  %v402 = vmul.f32 %v354, %v354
  %v403 = vmul.f32 %v357, %v357
  %v404 = vmul.f32 %v359, %v359
  %v405 = vmul.f32 %v362, %v362
  %v406 = vmul.f32 %v364, %v364
  %v407 = vmul.f32 %v367, %v367
  %v408 = vmul.f32 %v369, %v369
  %v409 = vadd.f32 %v393, %v394
  %v410 = vadd.f32 %v409, %v395
  %v411 = vadd.f32 %v410, %v396
  %v412 = vadd.f32 %v411, %v397
  %v413 = vadd.f32 %v412, %v398
  %v414 = vadd.f32 %v413, %v399
  %v415 = vadd.f32 %v414, %v400
  %v416 = vadd.f32 %v415, %v401
  %v417 = vadd.f32 %v416, %v402
  %v418 = vadd.f32 %v417, %v403
  %v419 = vadd.f32 %v418, %v404
  %v420 = vadd.f32 %v419, %v405
  %v421 = vadd.f32 %v420, %v406
  %v422 = vadd.f32 %v421, %v407
  %v423 = vadd.f32 %v422, %v408
  %v424 = vrot.slane %v423, 4
  %v425 = vadd.f32 %v423, %v424
  %v426 = vrot.slane %v425, 2
  %v427 = vadd.f32 %v425, %v426
  %v428 = vrot.slane %v427, 1
  %v429 = vadd.f32 %v427, %v428
  %v430 = vmul.f32 %v429, 0.0078125
  %v431 = vmul.f32 %v392, %v392
  %v432 = vsub.f32 %v430, %v431
  %v433 = vmax.f32 %v432, 0.0
  %v434 = vsub.f32 %v332, %v392
  %v435 = vsub.f32 %v334, %v392
  %v436 = vsub.f32 %v337, %v392
  %v437 = vsub.f32 %v339, %v392
  %v438 = vsub.f32 %v342, %v392
  %v439 = vsub.f32 %v344, %v392
  %v440 = vsub.f32 %v347, %v392
  %v441 = vsub.f32 %v349, %v392
  %v442 = vsub.f32 %v352, %v392
  %v443 = vsub.f32 %v354, %v392
  %v444 = vsub.f32 %v357, %v392
  %v445 = vsub.f32 %v359, %v392
  %v446 = vsub.f32 %v362, %v392
  %v447 = vsub.f32 %v364, %v392
  %v448 = vsub.f32 %v367, %v392
  %v449 = vsub.f32 %v369, %v392
  %v450 = vadd.f32 %v433, 1e-05
  %v451 = vrsqrt.pop %v450
  %v452 = vmul.f32 %v451, %v450
  %v453 = vmul.f32 %v452, %v451
  %v454 = vmul.f32 0.5, %v453
  %v455 = vsub.f32 1.5, %v454
  %v456 = vmul.f32 %v451, %v455
  %vm457 = vweird.f32 %v450
  %vm458 = vweird.f32 %v451
  %vm459 = vmor %vm457, %vm458
  %v460 = vsel %vm459, %v451, %v456
  %v461 = vmul.f32 %v434, %v460
  %v462 = vmul.f32 %v435, %v460
  %v463 = vmul.f32 %v436, %v460
  %v464 = vmul.f32 %v437, %v460
  %v465 = vmul.f32 %v438, %v460
  %v466 = vmul.f32 %v439, %v460
  %v467 = vmul.f32 %v440, %v460
  %v468 = vmul.f32 %v441, %v460
  %v469 = vmul.f32 %v442, %v460
  %v470 = vmul.f32 %v443, %v460
  %v471 = vmul.f32 %v444, %v460
  %v472 = vmul.f32 %v445, %v460
  %v473 = vmul.f32 %v446, %v460
  %v474 = vmul.f32 %v447, %v460
  %v475 = vmul.f32 %v448, %v460
  %v476 = vmul.f32 %v449, %v460
  %v477 = vmax.f32 %v461, 0.0
  %v478 = vmax.f32 %v462, 0.0
  %v479 = vmax.f32 %v463, 0.0
  %v480 = vmax.f32 %v464, 0.0
  %v481 = vmax.f32 %v465, 0.0
  %v482 = vmax.f32 %v466, 0.0
  %v483 = vmax.f32 %v467, 0.0
  %v484 = vmax.f32 %v468, 0.0
  %v485 = vmax.f32 %v469, 0.0
  %v486 = vmax.f32 %v470, 0.0
  %v487 = vmax.f32 %v471, 0.0
  %v488 = vmax.f32 %v472, 0.0
  %v489 = vmax.f32 %v473, 0.0
  %v490 = vmax.f32 %v474, 0.0
  %v491 = vmax.f32 %v475, 0.0
  %v492 = vmax.f32 %v476, 0.0
  %v493 = vpack.c.bf16 %v478, %v477
  %v494 = vpack.c.bf16 %v480, %v479
  %v495 = vpack.c.bf16 %v482, %v481
  %v496 = vpack.c.bf16 %v484, %v483
  %v497 = vpack.c.bf16 %v486, %v485
  %v498 = vpack.c.bf16 %v488, %v487
  %v499 = vpack.c.bf16 %v490, %v489
  %v500 = vpack.c.bf16 %v492, %v491
  %v501 = vld [vmem:[%s3] sm:$0xf]
  %v502 = vld [vmem:[%s3 + $0x4] sm:$0xf]
  %v503 = vld [vmem:[%s3 + $0x8] sm:$0xf]
  %v504 = vld [vmem:[%s3 + $0xc] sm:$0xf]
  %v505 = vld [vmem:[%s3 + $0x10] sm:$0xf]
  %v506 = vld [vmem:[%s3 + $0x14] sm:$0xf]
  %v507 = vld [vmem:[%s3 + $0x18] sm:$0xf]
  %v508 = vld [vmem:[%s3 + $0x1c] sm:$0xf]
  %v509 = vld [vmem:[%s3 + $0x20] sm:$0xf]
  %v510 = vld [vmem:[%s3 + $0x24] sm:$0xf]
  %v511 = vld [vmem:[%s3 + $0x28] sm:$0xf]
  %v512 = vld [vmem:[%s3 + $0x2c] sm:$0xf]
  %v513 = vld [vmem:[%s3 + $0x30] sm:$0xf]
  %v514 = vld [vmem:[%s3 + $0x34] sm:$0xf]
  %v515 = vld [vmem:[%s3 + $0x38] sm:$0xf]
  %v516 = vld [vmem:[%s3 + $0x3c] sm:$0xf]
  %v533 = vunpack.c.l.b16 %v501
  %v534 = vunpack.c.l.b16 %v502
  %v535 = vunpack.c.l.b16 %v503
  %v536 = vunpack.c.l.b16 %v504
  %v537 = vunpack.c.l.b16 %v505
  %v538 = vunpack.c.l.b16 %v506
  %v539 = vunpack.c.l.b16 %v507
  %v540 = vunpack.c.l.b16 %v508
  %v541 = vunpack.c.l.b16 %v509
  %v542 = vunpack.c.l.b16 %v510
  %v543 = vunpack.c.l.b16 %v511
  %v544 = vunpack.c.l.b16 %v512
  %v545 = vunpack.c.l.b16 %v513
  %v546 = vunpack.c.l.b16 %v514
  %v547 = vunpack.c.l.b16 %v515
  %v548 = vunpack.c.l.b16 %v516
  %v549 = vpack.c.b16 %v534, %v533
  %v550 = vpack.c.b16 %v536, %v535
  %v551 = vpack.c.b16 %v538, %v537
  %v552 = vpack.c.b16 %v540, %v539
  %v553 = vpack.c.b16 %v542, %v541
  %v554 = vpack.c.b16 %v544, %v543
  %v555 = vpack.c.b16 %v546, %v545
  %v556 = vpack.c.b16 %v548, %v547
  %565 = vmatpush.bf16.msra.mxu0 %v556
  %566 = vmatpush.bf16.msra.mxu0 %v555
  %567 = vmatpush.bf16.msra.mxu0 %v554
  %568 = vmatpush.bf16.msra.mxu0 %v553
  %569 = vmatpush.bf16.msra.mxu0 %v552
  %570 = vmatpush.bf16.msra.mxu0 %v551
  %571 = vmatpush.bf16.msra.mxu0 %v550
  %572 = vmatpush.bf16.msra.mxu0 %v549
  %573 = vmatmul.bf16.gmra.mxu0 %v493
  %v574 = vpop.f32.mrf.mxu0
  %v575 = vadd.f32 0.0, %v574
  %v576 = vpop.f32.mrf.mxu0
  %v577 = vadd.f32 0.0, %v576
  %578 = vmatmul.bf16.gmra.mxu0 %v494
  %v579 = vpop.f32.mrf.mxu0
  %v580 = vadd.f32 0.0, %v579
  %v581 = vpop.f32.mrf.mxu0
  %v582 = vadd.f32 0.0, %v581
  %583 = vmatmul.bf16.gmra.mxu0 %v495
  %v584 = vpop.f32.mrf.mxu0
  %v585 = vadd.f32 0.0, %v584
  %v586 = vpop.f32.mrf.mxu0
  %v587 = vadd.f32 0.0, %v586
  %588 = vmatmul.bf16.gmra.mxu0 %v496
  %v589 = vpop.f32.mrf.mxu0
  %v590 = vadd.f32 0.0, %v589
  %v591 = vpop.f32.mrf.mxu0
  %v592 = vadd.f32 0.0, %v591
  %593 = vmatmul.bf16.gmra.mxu0 %v497
  %v594 = vpop.f32.mrf.mxu0
  %v595 = vadd.f32 0.0, %v594
  %v596 = vpop.f32.mrf.mxu0
  %v597 = vadd.f32 0.0, %v596
  %598 = vmatmul.bf16.gmra.mxu0 %v498
  %v599 = vpop.f32.mrf.mxu0
  %v600 = vadd.f32 0.0, %v599
  %v601 = vpop.f32.mrf.mxu0
  %v602 = vadd.f32 0.0, %v601
  %603 = vmatmul.bf16.gmra.mxu0 %v499
  %v604 = vpop.f32.mrf.mxu0
  %v605 = vadd.f32 0.0, %v604
  %v606 = vpop.f32.mrf.mxu0
  %v607 = vadd.f32 0.0, %v606
  %608 = vmatmul.bf16.gmra.mxu0 %v500
  %v609 = vpop.f32.mrf.mxu0
  %v610 = vadd.f32 0.0, %v609
  %v611 = vpop.f32.mrf.mxu0
  %v612 = vadd.f32 0.0, %v611
  %613 = vdwg.mxu0
  %v615 = vperm.slane %v21, 0
  %v617 = vadd.f32 %v575, %v615
  %v618 = vadd.f32 %v577, %v615
  %v619 = vadd.f32 %v580, %v615
  %v620 = vadd.f32 %v582, %v615
  %v621 = vadd.f32 %v585, %v615
  %v622 = vadd.f32 %v587, %v615
  %v623 = vadd.f32 %v590, %v615
  %v624 = vadd.f32 %v592, %v615
  %v625 = vadd.f32 %v595, %v615
  %v626 = vadd.f32 %v597, %v615
  %v627 = vadd.f32 %v600, %v615
  %v628 = vadd.f32 %v602, %v615
  %v629 = vadd.f32 %v605, %v615
  %v630 = vadd.f32 %v607, %v615
  %v631 = vadd.f32 %v610, %v615
  %v632 = vadd.f32 %v612, %v615
  %633 = vst.msk [vmem:[%s5] sm:$0xff] %vm54, %v617
  %634 = vst.msk [vmem:[%s5 + $0x8] sm:$0xff] %vm54, %v618
  %635 = vst.msk [vmem:[%s5 + $0x10] sm:$0xff] %vm54, %v619
  %636 = vst.msk [vmem:[%s5 + $0x18] sm:$0xff] %vm54, %v620
  %637 = vst.msk [vmem:[%s5 + $0x20] sm:$0xff] %vm54, %v621
  %638 = vst.msk [vmem:[%s5 + $0x28] sm:$0xff] %vm54, %v622
  %639 = vst.msk [vmem:[%s5 + $0x30] sm:$0xff] %vm54, %v623
  %640 = vst.msk [vmem:[%s5 + $0x38] sm:$0xff] %vm54, %v624
  %641 = vst.msk [vmem:[%s5 + $0x40] sm:$0xff] %vm54, %v625
  %642 = vst.msk [vmem:[%s5 + $0x48] sm:$0xff] %vm54, %v626
  %643 = vst.msk [vmem:[%s5 + $0x50] sm:$0xff] %vm54, %v627
  %644 = vst.msk [vmem:[%s5 + $0x58] sm:$0xff] %vm54, %v628
  %645 = vst.msk [vmem:[%s5 + $0x60] sm:$0xff] %vm54, %v629
  %646 = vst.msk [vmem:[%s5 + $0x68] sm:$0xff] %vm54, %v630
  %647 = vst.msk [vmem:[%s5 + $0x70] sm:$0xff] %vm54, %v631
  %648 = vst.msk [vmem:[%s5 + $0x78] sm:$0xff] %vm54, %v632
  // Predicated region
  $region22: #{tpu_custom_call.1} parent=0 // pred_check
    _
  $region23: #{tpu_custom_call.1} parent=0 // pred_check_branch
    %650 = sbr.rel (0) target = $region25
  $region24: #{tpu_custom_call.1} parent=0 // pred_region
    _
  $region25: #{tpu_custom_call.1} parent=0 // pred_fallthru
    _
  // Predicated region
  $region26: #{tpu_custom_call.1} parent=0 // pred_check
    _
  $region27: #{tpu_custom_call.1} parent=0 // pred_check_branch
    %652 = sbr.rel (0) target = $region29
  $region28: #{tpu_custom_call.1} parent=0 // pred_region
    _
  $region29: #{tpu_custom_call.1} parent=0 // pred_fallthru
    _

</llo_original>
